<compile_context>
chip_gen: v6e
topology: v6e:2x2x1
jax: 0.10.0
libtpu: 0.0.40
codegen_flags: <defaults>
</compile_context>

<pallas_src>
import math

import jax
import jax.numpy as jnp
from jax.experimental import pallas as pl
from jax.experimental.pallas import tpu as pltpu


# ----------------------------- configuration -----------------------------
CAT_FIELD_DIMS = [10, 20, 30]          # 3 categorical fields
NUM_INPUT_DIM = 8                      # numerical feature dim
EMBED_DIM = 8
DEEP_LAYERS = [32, 16]                 # DeepFM deep tower
DNN_HIDDEN = [32, 16]                  # numerical DNN tower
BATCH = 16

F = len(CAT_FIELD_DIMS)
FE = F * EMBED_DIM                     # 24
TOTAL_FEAT = FE + NUM_INPUT_DIM + F    # deep_in | num | lin  = 24 + 8 + 3 = 35
NUM_OFF = FE                           # rows [24, 32) : numerical features
LIN_OFF = FE + NUM_INPUT_DIM           # rows [32, 35) : per-field linear terms
SLAB_LANES = 128                       # weight-slab lane width


# ------------------------------ helpers -----------------------------------
def _sigmoid(x):
    return 1.0 / (1.0 + jnp.exp(-x))     # exp on EUP; cheap at (1, tb)


def _round8(n):
    return ((n + 7) // 8) * 8


def build_weight_slab(params):
    """Pack every weight/bias into one (rows, 128) f32 slab.

    Matmul weights are stored transposed (out, in) so the kernel computes
    y^T = W^T @ x^T directly in the feature-major layout.  Final-layer (out=1)
    weights are stored as (in, 1) columns so the kernel does a broadcast
    multiply + sublane reduce instead of an M=1 matmul.  Every segment starts
    on an 8-row (sublane) boundary.
    """
    entries = []          # (row_offset, array)
    offsets = {}          # name -> (row_offset, rows, cols)
    row = 0

    def add(name, arr):
        nonlocal row
        arr = jnp.asarray(arr, jnp.float32)
        r, c = arr.shape
        offsets[name] = (row, r, c)
        entries.append((row, arr))
        row += _round8(r)

    for li, (w, b) in enumerate(params["deep"]):
        add(f"deep_w{li}", w.T)                    # (out, in)
        add(f"deep_b{li}", b.T)                    # (out, 1)
    wf, bf = params["deepfm_final"]                # (2+D_last, 1), (1, 1)
    add("fm_w_ls", wf[0:2, :])                     # [linear, second] coeffs
    add("fm_w_deep", wf[2:, :])                    # deep-feature coeffs
    add("fm_b", bf.T)
    for li, (w, b) in enumerate(params["dnn"]):
        add(f"dnn_w{li}", w.T)
        add(f"dnn_b{li}", b.T)
    wm, bm = params["model_final"]                 # (H_last + 1, 1), (1, 1)
    add("final_w_dnn", wm[:DNN_HIDDEN[-1], :])
    add("final_w_cat", wm[DNN_HIDDEN[-1]:, :])
    add("final_b", bm.T)

    total_rows = _round8(row)
    slab = jnp.zeros((total_rows, SLAB_LANES), jnp.float32)
    for off, arr in entries:
        slab = slab.at[off:off + arr.shape[0], 0:arr.shape[1]].set(arr)
    return slab, offsets


# ------------------------------ Pallas kernel -----------------------------
def make_kernel(offsets, n_deep, n_dnn):
    def seg(w_ref, name):
        off, r, c = offsets[name]          # static python ints -> free slices
        return w_ref[off:off + r, 0:c]

    def kernel(x_ref, w_ref, out_ref):
        # x_ref: (TOTAL_FEAT, tb) feature-major, batch on the lane axis.

        # ---- FM second order, straight from the flattened embedding rows ----
        e = x_ref[0:EMBED_DIM, :]                              # field 0 (E, tb)
        sum_e, sum_sq = e, e * e
        for f in range(1, F):
            e = x_ref[f * EMBED_DIM:(f + 1) * EMBED_DIM, :]
            sum_e = sum_e + e
            sum_sq = sum_sq + e * e
        second = 0.5 * jnp.sum(sum_e * sum_e - sum_sq,
                               axis=0, keepdims=True)          # (1, tb)

        # ---- FM first order: sum of per-field linear embeddings ----
        linear_out = jnp.sum(x_ref[LIN_OFF:LIN_OFF + F, :],
                             axis=0, keepdims=True)            # (1, tb)

        # ---- deep tower on flattened embeddings ----
        h = x_ref[0:FE, :]                                     # (FE, tb)
        for li in range(n_deep):
            w = seg(w_ref, f"deep_w{li}")
            b = seg(w_ref, f"deep_b{li}")
            h = jnp.maximum(
                jnp.dot(w, h, preferred_element_type=jnp.float32) + b, 0.0)

        # ---- DeepFM final layer + sigmoid (out=1 -> reduce, no matmul) ----
        wf_ls = seg(w_ref, "fm_w_ls")                          # (2, 1)
        wf_dp = seg(w_ref, "fm_w_deep")                        # (D_last, 1)
        bf = seg(w_ref, "fm_b")                                # (1, 1)
        cat_logit = (wf_ls[0:1, :] * linear_out
                     + wf_ls[1:2, :] * second
                     + jnp.sum(wf_dp * h, axis=0, keepdims=True)
                     + bf)
        cat_out = _sigmoid(cat_logit)                          # (1, tb)

        # ---- numerical DNN tower ----
        d = x_ref[NUM_OFF:NUM_OFF + NUM_INPUT_DIM, :]          # (N, tb)
        for li in range(n_dnn):
            w = seg(w_ref, f"dnn_w{li}")
            b = seg(w_ref, f"dnn_b{li}")
            d = jnp.maximum(
                jnp.dot(w, d, preferred_element_type=jnp.float32) + b, 0.0)

        # ---- model final layer + sigmoid ----
        wm_d = seg(w_ref, "final_w_dnn")                       # (H_last, 1)
        wm_c = seg(w_ref, "final_w_cat")                       # (1, 1)
        bm = seg(w_ref, "final_b")                             # (1, 1)
        logit = (jnp.sum(wm_d * d, axis=0, keepdims=True)
                 + wm_c * cat_out
                 + bm)
        out_ref[...] = _sigmoid(logit)                         # (1, tb) lane-dense

    return kernel


# ------------------------------ host wrapper ------------------------------
def init_params(key):
    """Deterministic parameter init mirroring the PyTorch module's shapes."""
    params = {}
    keys = jax.random.split(key, 64)
    k = iter(keys)

    params["emb_tables"] = [
        jax.random.normal(next(k), (fd, EMBED_DIM), jnp.float32)
        for fd in CAT_FIELD_DIMS]
    params["lin_tables"] = [
        jax.random.normal(next(k), (fd, 1), jnp.float32)
        for fd in CAT_FIELD_DIMS]

    def linear(kin, in_dim, out_dim):
        bound = 1.0 / math.sqrt(in_dim)
        w = jax.random.uniform(kin, (in_dim, out_dim), jnp.float32, -bound, bound)
        b = jax.random.uniform(jax.random.fold_in(kin, 1), (1, out_dim),
                               jnp.float32, -bound, bound)
        return w, b

    deep_ws = []
    in_dim = FE
    for out_dim in DEEP_LAYERS:
        deep_ws.append(linear(next(k), in_dim, out_dim))
        in_dim = out_dim
    params["deep"] = deep_ws
    params["deepfm_final"] = linear(next(k), 2 + DEEP_LAYERS[-1], 1)

    dnn_ws = []
    in_dim = NUM_INPUT_DIM
    for out_dim in DNN_HIDDEN:
        dnn_ws.append(linear(next(k), in_dim, out_dim))
        in_dim = out_dim
    params["dnn"] = dnn_ws
    params["model_final"] = linear(next(k), DNN_HIDDEN[-1] + 1, 1)
    return params


def deepfm_dnn_forward(params, cat_data, num_data, tile_b=None):
    """cat_data: (B, F) int32, num_data: (B, N) f32 -> (B,) f32."""
    B = cat_data.shape[0]
    if tile_b is None:
        # One tile for small batches; 512-row lane-dense tiles for big batches
        # (512 is a multiple of 128 so the (8,128) block rule stays satisfied).
        tile_b = B if B <= 512 else 512
    n_tiles = math.ceil(B / tile_b)
    b_pad = n_tiles * tile_b

    # --- glue: embedding gathers (data-dependent table lookups stay in XLA) ---
    embeds = jnp.stack(
        [params["emb_tables"][i][cat_data[:, i]] for i in range(F)], axis=1)   # (B,F,E)
    deep_in = embeds.reshape(B, FE)                                            # (B,FE)
    lin = jnp.concatenate(
        [params["lin_tables"][i][cat_data[:, i]] for i in range(F)], axis=1)   # (B,F)

    feats = jnp.concatenate([deep_in, num_data, lin], axis=1)                  # (B,35)
    if b_pad != B:
        feats = jnp.pad(feats, ((0, b_pad - B), (0, 0)))
    x_slab = feats.T                                      # (35, b_pad) feature-major

    w_slab, offsets = build_weight_slab(params)
    kernel = make_kernel(offsets, len(DEEP_LAYERS), len(DNN_HIDDEN))

    out = pl.pallas_call(
        kernel,
        out_shape=jax.ShapeDtypeStruct((1, b_pad), jnp.float32),
        grid_spec=pltpu.PrefetchScalarGridSpec(
            num_scalar_prefetch=0,
            grid=(n_tiles,),
            in_specs=[
                # per-row activations: batch on the lane axis
                pl.BlockSpec((TOTAL_FEAT, tile_b), lambda i: (0, i)),
                # single resident weight slab (constant block index -> no re-DMA)
                pl.BlockSpec(w_slab.shape, lambda i: (0, 0)),
            ],
            out_specs=pl.BlockSpec((1, tile_b), lambda i: (0, i)),
        ),
        compiler_params=pltpu.CompilerParams(
            dimension_semantics=("parallel",)),
    )(x_slab, w_slab)

    return out[0, :B]


# ------------------------------ pure-JAX reference ------------------------------
def reference_forward(params, cat_data, num_data):
    B = cat_data.shape[0]
    embeds = jnp.stack(
        [params["emb_tables"][i][cat_data[:, i]] for i in range(F)], axis=1)
    lin = jnp.concatenate(
        [params["lin_tables"][i][cat_data[:, i]] for i in range(F)], axis=1)
    linear_out = lin.sum(axis=1, keepdims=True)
    sum_e = embeds.sum(axis=1)
    second = 0.5 * (sum_e ** 2 - (embeds ** 2).sum(axis=1)).sum(axis=1, keepdims=True)
    h = embeds.reshape(B, -1)
    for w, b in params["deep"]:
        h = jnp.maximum(h @ w + b, 0.0)
    wf, bf = params["deepfm_final"]
    cat_out = jax.nn.sigmoid(
        jnp.concatenate([linear_out, second, h], axis=1) @ wf + bf)
    d = num_data
    for w, b in params["dnn"]:
        d = jnp.maximum(d @ w + b, 0.0)
    wm, bm = params["model_final"]
    out = jax.nn.sigmoid(jnp.concatenate([d, cat_out], axis=1) @ wm + bm)
    return out[:, 0]


# ------------------------------------ main ------------------------------------
if __name__ == "__main__":
    key = jax.random.PRNGKey(0)
    k_par, k_cat, k_num = jax.random.split(key, 3)

    params = init_params(k_par)

    cat_data = jnp.stack(
        [jax.random.randint(jax.random.fold_in(k_cat, i), (BATCH,), 0, fd)
         for i, fd in enumerate(CAT_FIELD_DIMS)], axis=1).astype(jnp.int32)   # (B, F)
    num_data = jax.random.normal(k_num, (BATCH, NUM_INPUT_DIM), jnp.float32)  # (B, N)

    out = deepfm_dnn_forward(params, cat_data, num_data)
    out = jax.block_until_ready(out)

    ref = reference_forward(params, cat_data, num_data)
    assert out.shape == (BATCH,)
    assert jnp.allclose(out, ref, atol=1e-5, rtol=1e-5), (out, ref)

    print("KERNEL_OK")
</pallas_src>

<mosaic_0001>
module attributes {stable_mosaic.version = 11 : i64} {
  func.func @kernel(%arg0: i32, %arg1: memref<35x16xf32, #tpu.memory_space<vmem>>, %arg2: memref<256x128xf32, #tpu.memory_space<vmem>>, %arg3: memref<1x16xf32, #tpu.memory_space<vmem>>) attributes {dimension_semantics = [#tpu.dimension_semantics<parallel>], iteration_bounds = array<i64: 1>, scalar_prefetch = 0 : i64, scratch_operands = 0 : i64, tpu.core_type = #tpu.core_type<tc>, window_params = [{transform_indices = @transform_0, window_bounds = array<i64: 35, 16>}, {pipeline_mode = #tpu.pipeline_mode<synchronous>, transform_indices = @transform_1, window_bounds = array<i64: 256, 128>}, {transform_indices = @transform_2, window_bounds = array<i64: 1, 16>}]} {
    %c0 = arith.constant 0 : index
    %c0_0 = arith.constant 0 : index
    %0 = vector.load %arg1[%c0, %c0_0] : memref<35x16xf32, #tpu.memory_space<vmem>>, vector<8x16xf32>
    %1 = arith.mulf %0, %0 : vector<8x16xf32>
    %c8 = arith.constant 8 : index
    %c0_1 = arith.constant 0 : index
    %2 = vector.load %arg1[%c8, %c0_1] : memref<35x16xf32, #tpu.memory_space<vmem>>, vector<8x16xf32>
    %3 = arith.addf %0, %2 : vector<8x16xf32>
    %4 = arith.mulf %2, %2 : vector<8x16xf32>
    %5 = arith.addf %1, %4 : vector<8x16xf32>
    %c16 = arith.constant 16 : index
    %c0_2 = arith.constant 0 : index
    %6 = vector.load %arg1[%c16, %c0_2] : memref<35x16xf32, #tpu.memory_space<vmem>>, vector<8x16xf32>
    %7 = arith.addf %3, %6 : vector<8x16xf32>
    %8 = arith.mulf %6, %6 : vector<8x16xf32>
    %9 = arith.addf %5, %8 : vector<8x16xf32>
    %10 = arith.mulf %7, %7 : vector<8x16xf32>
    %11 = arith.subf %10, %9 : vector<8x16xf32>
    %cst = arith.constant dense<0.000000e+00> : vector<16xf32>
    %12 = vector.multi_reduction <add>, %11, %cst [0] : vector<8x16xf32> to vector<16xf32>
    %13 = vector.shape_cast %12 : vector<16xf32> to vector<1x16xf32>
    %cst_3 = arith.constant 5.000000e-01 : f32
    %14 = vector.broadcast %cst_3 : f32 to vector<1x16xf32>
    %15 = arith.mulf %14, %13 : vector<1x16xf32>
    %c32 = arith.constant 32 : index
    %c0_4 = arith.constant 0 : index
    %16 = vector.load %arg1[%c32, %c0_4] : memref<35x16xf32, #tpu.memory_space<vmem>>, vector<3x16xf32>
    %cst_5 = arith.constant dense<0.000000e+00> : vector<16xf32>
    %17 = vector.multi_reduction <add>, %16, %cst_5 [0] : vector<3x16xf32> to vector<16xf32>
    %18 = vector.shape_cast %17 : vector<16xf32> to vector<1x16xf32>
    %c0_6 = arith.constant 0 : index
    %c0_7 = arith.constant 0 : index
    %19 = vector.load %arg1[%c0_6, %c0_7] : memref<35x16xf32, #tpu.memory_space<vmem>>, vector<24x16xf32>
    %c0_8 = arith.constant 0 : index
    %c0_9 = arith.constant 0 : index
    %20 = vector.load %arg2[%c0_8, %c0_9] : memref<256x128xf32, #tpu.memory_space<vmem>>, vector<32x24xf32>
    %c32_10 = arith.constant 32 : index
    %c0_11 = arith.constant 0 : index
    %21 = vector.load %arg2[%c32_10, %c0_11] : memref<256x128xf32, #tpu.memory_space<vmem>>, vector<32x1xf32>
    %cst_12 = arith.constant dense<0.000000e+00> : vector<32x16xf32>
    %22 = tpu.matmul %20, %19, %cst_12 {dimension_numbers = #tpu.dot_dimension_numbers<[1], [0], [0], [1], [0, 0, 1, 1], [], []>} : vector<32x24xf32>, vector<24x16xf32>, vector<32x16xf32> -> vector<32x16xf32>
    %23 = vector.broadcast %21 : vector<32x1xf32> to vector<32x16xf32>
    %24 = arith.addf %22, %23 : vector<32x16xf32>
    %cst_13 = arith.constant 0.000000e+00 : f32
    %25 = vector.broadcast %cst_13 : f32 to vector<32x16xf32>
    %26 = arith.maximumf %24, %25 : vector<32x16xf32>
    %c64 = arith.constant 64 : index
    %c0_14 = arith.constant 0 : index
    %27 = vector.load %arg2[%c64, %c0_14] : memref<256x128xf32, #tpu.memory_space<vmem>>, vector<16x32xf32>
    %c80 = arith.constant 80 : index
    %c0_15 = arith.constant 0 : index
    %28 = vector.load %arg2[%c80, %c0_15] : memref<256x128xf32, #tpu.memory_space<vmem>>, vector<16x1xf32>
    %cst_16 = arith.constant dense<0.000000e+00> : vector<16x16xf32>
    %29 = tpu.matmul %27, %26, %cst_16 {dimension_numbers = #tpu.dot_dimension_numbers<[1], [0], [0], [1], [0, 0, 1, 1], [], []>} : vector<16x32xf32>, vector<32x16xf32>, vector<16x16xf32> -> vector<16x16xf32>
    %30 = vector.broadcast %28 : vector<16x1xf32> to vector<16x16xf32>
    %31 = arith.addf %29, %30 : vector<16x16xf32>
    %cst_17 = arith.constant 0.000000e+00 : f32
    %32 = vector.broadcast %cst_17 : f32 to vector<16x16xf32>
    %33 = arith.maximumf %31, %32 : vector<16x16xf32>
    %c96 = arith.constant 96 : index
    %c0_18 = arith.constant 0 : index
    %34 = vector.load %arg2[%c96, %c0_18] : memref<256x128xf32, #tpu.memory_space<vmem>>, vector<2x1xf32>
    %c104 = arith.constant 104 : index
    %c0_19 = arith.constant 0 : index
    %35 = vector.load %arg2[%c104, %c0_19] : memref<256x128xf32, #tpu.memory_space<vmem>>, vector<16x1xf32>
    %c120 = arith.constant 120 : index
    %c0_20 = arith.constant 0 : index
    %36 = vector.load %arg2[%c120, %c0_20] : memref<256x128xf32, #tpu.memory_space<vmem>>, vector<1x1xf32>
    %37 = vector.extract_strided_slice %34 {offsets = [0, 0], sizes = [1, 1], strides = [1, 1]} : vector<2x1xf32> to vector<1x1xf32>
    %38 = vector.broadcast %37 : vector<1x1xf32> to vector<1x16xf32>
    %39 = arith.mulf %38, %18 : vector<1x16xf32>
    %40 = vector.extract_strided_slice %34 {offsets = [1, 0], sizes = [1, 1], strides = [1, 1]} : vector<2x1xf32> to vector<1x1xf32>
    %41 = vector.broadcast %40 : vector<1x1xf32> to vector<1x16xf32>
    %42 = arith.mulf %41, %15 : vector<1x16xf32>
    %43 = arith.addf %39, %42 : vector<1x16xf32>
    %44 = vector.broadcast %35 : vector<16x1xf32> to vector<16x16xf32>
    %45 = arith.mulf %44, %33 : vector<16x16xf32>
    %cst_21 = arith.constant dense<0.000000e+00> : vector<16xf32>
    %46 = vector.multi_reduction <add>, %45, %cst_21 [0] : vector<16x16xf32> to vector<16xf32>
    %47 = vector.shape_cast %46 : vector<16xf32> to vector<1x16xf32>
    %48 = arith.addf %43, %47 : vector<1x16xf32>
    %49 = vector.broadcast %36 : vector<1x1xf32> to vector<1x16xf32>
    %50 = arith.addf %48, %49 : vector<1x16xf32>
    %cst_22 = arith.constant 0.000000e+00 : f32
    %51 = vector.broadcast %cst_22 : f32 to vector<1x16xf32>
    %52 = arith.subf %51, %50 : vector<1x16xf32>
    %53 = math.exp %52 : vector<1x16xf32>
    %cst_23 = arith.constant 1.000000e+00 : f32
    %54 = vector.broadcast %cst_23 : f32 to vector<1x16xf32>
    %55 = arith.addf %54, %53 : vector<1x16xf32>
    %cst_24 = arith.constant 1.000000e+00 : f32
    %56 = vector.broadcast %cst_24 : f32 to vector<1x16xf32>
    %57 = arith.divf %56, %55 : vector<1x16xf32>
    %c24 = arith.constant 24 : index
    %c0_25 = arith.constant 0 : index
    %58 = vector.load %arg1[%c24, %c0_25] : memref<35x16xf32, #tpu.memory_space<vmem>>, vector<8x16xf32>
    %c128 = arith.constant 128 : index
    %c0_26 = arith.constant 0 : index
    %59 = vector.load %arg2[%c128, %c0_26] : memref<256x128xf32, #tpu.memory_space<vmem>>, vector<32x8xf32>
    %c160 = arith.constant 160 : index
    %c0_27 = arith.constant 0 : index
    %60 = vector.load %arg2[%c160, %c0_27] : memref<256x128xf32, #tpu.memory_space<vmem>>, vector<32x1xf32>
    %cst_28 = arith.constant dense<0.000000e+00> : vector<32x16xf32>
    %61 = tpu.matmul %59, %58, %cst_28 {dimension_numbers = #tpu.dot_dimension_numbers<[1], [0], [0], [1], [0, 0, 1, 1], [], []>} : vector<32x8xf32>, vector<8x16xf32>, vector<32x16xf32> -> vector<32x16xf32>
    %62 = vector.broadcast %60 : vector<32x1xf32> to vector<32x16xf32>
    %63 = arith.addf %61, %62 : vector<32x16xf32>
    %cst_29 = arith.constant 0.000000e+00 : f32
    %64 = vector.broadcast %cst_29 : f32 to vector<32x16xf32>
    %65 = arith.maximumf %63, %64 : vector<32x16xf32>
    %c192 = arith.constant 192 : index
    %c0_30 = arith.constant 0 : index
    %66 = vector.load %arg2[%c192, %c0_30] : memref<256x128xf32, #tpu.memory_space<vmem>>, vector<16x32xf32>
    %c208 = arith.constant 208 : index
    %c0_31 = arith.constant 0 : index
    %67 = vector.load %arg2[%c208, %c0_31] : memref<256x128xf32, #tpu.memory_space<vmem>>, vector<16x1xf32>
    %cst_32 = arith.constant dense<0.000000e+00> : vector<16x16xf32>
    %68 = tpu.matmul %66, %65, %cst_32 {dimension_numbers = #tpu.dot_dimension_numbers<[1], [0], [0], [1], [0, 0, 1, 1], [], []>} : vector<16x32xf32>, vector<32x16xf32>, vector<16x16xf32> -> vector<16x16xf32>
    %69 = vector.broadcast %67 : vector<16x1xf32> to vector<16x16xf32>
    %70 = arith.addf %68, %69 : vector<16x16xf32>
    %cst_33 = arith.constant 0.000000e+00 : f32
    %71 = vector.broadcast %cst_33 : f32 to vector<16x16xf32>
    %72 = arith.maximumf %70, %71 : vector<16x16xf32>
    %c224 = arith.constant 224 : index
    %c0_34 = arith.constant 0 : index
    %73 = vector.load %arg2[%c224, %c0_34] : memref<256x128xf32, #tpu.memory_space<vmem>>, vector<16x1xf32>
    %c240 = arith.constant 240 : index
    %c0_35 = arith.constant 0 : index
    %74 = vector.load %arg2[%c240, %c0_35] : memref<256x128xf32, #tpu.memory_space<vmem>>, vector<1x1xf32>
    %c248 = arith.constant 248 : index
    %c0_36 = arith.constant 0 : index
    %75 = vector.load %arg2[%c248, %c0_36] : memref<256x128xf32, #tpu.memory_space<vmem>>, vector<1x1xf32>
    %76 = vector.broadcast %73 : vector<16x1xf32> to vector<16x16xf32>
    %77 = arith.mulf %76, %72 : vector<16x16xf32>
    %cst_37 = arith.constant dense<0.000000e+00> : vector<16xf32>
    %78 = vector.multi_reduction <add>, %77, %cst_37 [0] : vector<16x16xf32> to vector<16xf32>
    %79 = vector.shape_cast %78 : vector<16xf32> to vector<1x16xf32>
    %80 = vector.broadcast %74 : vector<1x1xf32> to vector<1x16xf32>
    %81 = arith.mulf %80, %57 : vector<1x16xf32>
    %82 = arith.addf %79, %81 : vector<1x16xf32>
    %83 = vector.broadcast %75 : vector<1x1xf32> to vector<1x16xf32>
    %84 = arith.addf %82, %83 : vector<1x16xf32>
    %cst_38 = arith.constant 0.000000e+00 : f32
    %85 = vector.broadcast %cst_38 : f32 to vector<1x16xf32>
    %86 = arith.subf %85, %84 : vector<1x16xf32>
    %87 = math.exp %86 : vector<1x16xf32>
    %cst_39 = arith.constant 1.000000e+00 : f32
    %88 = vector.broadcast %cst_39 : f32 to vector<1x16xf32>
    %89 = arith.addf %88, %87 : vector<1x16xf32>
    %cst_40 = arith.constant 1.000000e+00 : f32
    %90 = vector.broadcast %cst_40 : f32 to vector<1x16xf32>
    %91 = arith.divf %90, %89 : vector<1x16xf32>
    %c0_41 = arith.constant 0 : index
    %c0_42 = arith.constant 0 : index
    %92 = vector.load %arg3[%c0_41, %c0_42] : memref<1x16xf32, #tpu.memory_space<vmem>>, vector<1x16xf32>
    tpu.vector_store %arg3[%c0_41, %c0_42], %91 {strides = array<i32>} : memref<1x16xf32, #tpu.memory_space<vmem>>, vector<1x16xf32>,
    return
  }
  func.func @transform_0(%arg0: i32) -> (i32, i32) {
    %c0_i32 = arith.constant 0 : i32
    %c0_i32_0 = arith.constant 0 : i32
    return %c0_i32, %arg0 : i32, i32
  }
  func.func @transform_1(%arg0: i32) -> (i32, i32) {
    %c0_i32 = arith.constant 0 : i32
    %c0_i32_0 = arith.constant 0 : i32
    %c0_i32_1 = arith.constant 0 : i32
    return %c0_i32, %c0_i32_0 : i32, i32
  }
  func.func @transform_2(%arg0: i32) -> (i32, i32) {
    %c0_i32 = arith.constant 0 : i32
    %c0_i32_0 = arith.constant 0 : i32
    return %c0_i32, %arg0 : i32, i32
  }
}

</mosaic_0001>

<llo_original>
// kernel: tpu_custom_call.1
$region0: #{tpu_custom_call.1}
  #allocation0 [shape = 'u32[]', space=smem, size = 0x4, offset = 0x4, fixed_abs, tag = 'smem constant byte address 0x4 - core index']
  #allocation1 [shape = 'u32[144,128]{1,0:T(1,128)}', space=vmem, size = 0x12000, scoped, tag = 'internal scratch']
  %s0 = inlined_call_operand.vmem [shape: f32[35,16], index: 0, kind: input, shape index: {}]
  %s1 = inlined_call_operand.hbm [shape: f32[256,128], index: 1, kind: input, shape index: {}]
  %s2 = inlined_call_operand.hbm [shape: f32[1,16], index: 2, kind: output, shape index: {}]
  %s3 = sld [smem:[#allocation0]]
  $region22: #{tpu_custom_call.1} parent=0
    _
  %s5 = ssub.s32 1, %s3
  %s6 = scalar_select 0, %s5, %s3
  $region1: #{tpu_custom_call.1} parent=0
    #allocation2 [shape = 'u8[131072]{0}', space=vmem, size = 0x20000, scoped, tag = 'input window, operand 1, single buffered']
    #allocation3 [shape = 's32[1]{0}', space=sflag, size = 0x4, scoped, tag = 'scoped memory for tpu_custom_call.1']
    #allocation4 [shape = 's32[1]{0}', space=sflag, size = 0x4, scoped, tag = 'scoped memory for tpu_custom_call.1']
    #allocation5 [shape = 'u8[512]{0}', space=vmem, size = 0x400, scoped, tag = 'output window, operand 0, single buffered']
    %7 = vsyncpa [#allocation3], 0
    %8 = vsyncpa [#allocation4], 0
    // Predicated region
    $region2: #{tpu_custom_call.1} parent=1 // pred_check
      _
    $region3: #{tpu_custom_call.1} parent=1 // pred_check_branch
      %10 = sbr.rel (0) target = $region5
    $region4: #{tpu_custom_call.1} parent=1 // pred_region
      _
    $region5: #{tpu_custom_call.1} parent=1 // pred_fallthru
      _
    // Predicated region
    $region6: #{tpu_custom_call.1} parent=1 // pred_check
      _
    $region7: #{tpu_custom_call.1} parent=1 // pred_check_branch
      %12 = sbr.rel (0) target = $region9
    $region8: #{tpu_custom_call.1} parent=1 // pred_region
      %s14 = ssub.s32 4096, 4096
      %15 = vsyncadd [#allocation3], %s14
      %s16 = sshll.u32 [#allocation2], 4
      %s17 = int_to_ptr.vmem [resolvable:$true] %s16
      %22 = dma.hbm_to_vmem [thread:$0]  %s1, 4096, %s17, [#allocation3], 128, 128, 8
    $region9: #{tpu_custom_call.1} parent=1 // pred_fallthru
      _
    // Predicated region
    $region10: #{tpu_custom_call.1} parent=1 // pred_check
      _
    $region11: #{tpu_custom_call.1} parent=1 // pred_check_branch
      %24 = sbr.rel (0) target = $region13
    $region12: #{tpu_custom_call.1} parent=1 // pred_region
      %25 = dma.done [#allocation3], 4096
    $region13: #{tpu_custom_call.1} parent=1 // pred_fallthru
      _
    %v26 = vld [vmem:[%s0] sm:$0xff]
    %v27 = vmul.f32 %v26, %v26
    %v28 = vld [vmem:[%s0 + $0x8] sm:$0xff]
    %v29 = vadd.f32 %v26, %v28
    %v30 = vmul.f32 %v28, %v28
    %v31 = vadd.f32 %v27, %v30
    %v32 = vld [vmem:[%s0 + $0x10] sm:$0xff]
    %v33 = vadd.f32 %v29, %v32
    %v34 = vmul.f32 %v32, %v32
    %v35 = vadd.f32 %v31, %v34
    %v36 = vmul.f32 %v33, %v33
    %v37 = vsub.f32 %v36, %v35
    %vm38 = vcmask 130048
    %v39 = vsel %vm38, %v37, 0.0
    %v40 = vrot.slane %v39, 4
    %v41 = vadd.f32 %v39, %v40
    %v42 = vrot.slane %v41, 2
    %v43 = vadd.f32 %v41, %v42
    %v44 = vrot.slane %v43, 1
    %v45 = vadd.f32 %v43, %v44
    %v46 = vmul.f32 %v45, 0.5
    %v47 = vld [vmem:[%s0 + $0x20] sm:$0x7]
    %vm48 = vcmask 124928
    %v49 = vsel %vm48, %v47, 0.0
    %v50 = vrot.slane %v49, 4
    %v51 = vadd.f32 %v49, %v50
    %v52 = vrot.slane %v51, 2
    %v53 = vadd.f32 %v51, %v52
    %v54 = vrot.slane %v53, 1
    %v55 = vadd.f32 %v53, %v54
    %v56 = vld [vmem:[#allocation2] sm:$0xff]
    %v57 = vld [vmem:[#allocation2 + $0x8] sm:$0xff]
    %v58 = vld [vmem:[#allocation2 + $0x10] sm:$0xff]
    %v59 = vld [vmem:[#allocation2 + $0x18] sm:$0xff]
    %v60 = vld [vmem:[#allocation2 + $0x20] sm:$0xff]
    %v61 = vld [vmem:[#allocation2 + $0x28] sm:$0xff]
    %v62 = vld [vmem:[#allocation2 + $0x30] sm:$0xff]
    %v63 = vld [vmem:[#allocation2 + $0x38] sm:$0xff]
    %65 = vset.pattern.permute.xlu0 0
    %66 = vperm.xlu0 %65, %v60
    %v67 = vpop.permute.xlu0 %66
    %70 = vset.pattern.permute.xlu0 0
    %71 = vperm.xlu0 %70, %v61
    %v72 = vpop.permute.xlu0 %71
    %75 = vset.pattern.permute.xlu0 0
    %76 = vperm.xlu0 %75, %v62
    %v77 = vpop.permute.xlu0 %76
    %80 = vset.pattern.permute.xlu0 0
    %81 = vperm.xlu0 %80, %v63
    %v82 = vpop.permute.xlu0 %81
    %vm84 = vcmask 195584
    %v86 = vsel %vm84, %v56, 0
    %v89 = vsel %vm84, %v57, 0
    %v92 = vsel %vm84, %v58, 0
    %v95 = vsel %vm84, %v59, 0
    %97 = vmatprep.subr.mxu0 0.0
    %98 = vmatpush1.msra.mxu0 0.0
    %99 = vmatprep.subr.mxu0 0.0
    %100 = vmatpush1.msra.mxu0 0.0
    %101 = vmatprep.subr.mxu0 0.0
    %102 = vmatpush1.msra.mxu0 0.0
    %103 = vmatprep.subr.mxu0 0.0
    %104 = vmatpush1.msra.mxu0 0.0
    %105 = vmatprep.subr.mxu0 0.0
    %106 = vmatpush1.msra.mxu0 0.0
    %107 = vmatprep.subr.mxu0 0.0
    %108 = vmatpush1.msra.mxu0 0.0
    %109 = vmatprep.subr.mxu0 0.0
    %110 = vmatpush1.msra.mxu0 0.0
    %111 = vmatprep.subr.mxu0 0.0
    %112 = vmatpush1.msra.mxu0 0.0
    %113 = vmatprep.subr.mxu0 0.0
    %114 = vmatpush1.msra.mxu0 0.0
    %115 = vmatprep.subr.mxu0 0.0
    %116 = vmatpush1.msra.mxu0 0.0
    %117 = vmatprep.subr.mxu0 0.0
    %118 = vmatpush1.msra.mxu0 0.0
    %119 = vmatprep.subr.mxu0 0.0
    %120 = vmatpush1.msra.mxu0 0.0
    %121 = vmatprep.subr.mxu0 0.0
    %122 = vmatpush1.msra.mxu0 0.0
    %123 = vmatprep.subr.mxu0 0.0
    %124 = vmatpush1.msra.mxu0 %v32
    %125 = vmatprep.subr.mxu0 0.0
    %126 = vmatpush1.msra.mxu0 %v28
    %127 = vmatprep.subr.mxu0 0.0
    %128 = vmatpush1.msra.mxu0 %v26
    %129 = vmatprep.subr.mxu0 0.0
    %130 = vmatpush2.msra.mxu0 0.0
    %131 = vmatprep.subr.mxu0 0.0
    %132 = vmatpush2.msra.mxu0 0.0
    %133 = vmatprep.subr.mxu0 0.0
    %134 = vmatpush2.msra.mxu0 0.0
    %135 = vmatprep.subr.mxu0 0.0
    %136 = vmatpush2.msra.mxu0 0.0
    %137 = vmatprep.subr.mxu0 0.0
    %138 = vmatpush2.msra.mxu0 0.0
    %139 = vmatprep.subr.mxu0 0.0
    %140 = vmatpush2.msra.mxu0 0.0
    %141 = vmatprep.subr.mxu0 0.0
    %142 = vmatpush2.msra.mxu0 0.0
    %143 = vmatprep.subr.mxu0 0.0
    %144 = vmatpush2.msra.mxu0 0.0
    %145 = vmatprep.subr.mxu0 0.0
    %146 = vmatpush2.msra.mxu0 0.0
    %147 = vmatprep.subr.mxu0 0.0
    %148 = vmatpush2.msra.mxu0 0.0
    %149 = vmatprep.subr.mxu0 0.0
    %150 = vmatpush2.msra.mxu0 0.0
    %151 = vmatprep.subr.mxu0 0.0
    %152 = vmatpush2.msra.mxu0 0.0
    %153 = vmatprep.subr.mxu0 0.0
    %154 = vmatpush2.msra.mxu0 0.0
    %155 = vmatprep.subr.mxu0 0.0
    %156 = vmatpush2.msra.mxu0 0.0
    %157 = vmatprep.subr.mxu0 0.0
    %158 = vmatpush2.msra.mxu0 0.0
    %159 = vmatprep.subr.mxu0 0.0
    %160 = vmatpush2.msra.mxu0 0.0
    %161 = vmatprep.mubr.f32.mxu0 0.0
    %162 = vmatmul.mubr.f32.gmra.mxu0 %v86
    %v163 = vpop.f32.mrf.mxu0
    %v164 = vadd.f32 %v67, %v163
    %v165 = vpop.f32.mrf.mxu0
    %166 = vmatprep.mubr.f32.mxu0 0.0
    %167 = vmatmul.mubr.f32.gmra.mxu0 %v89
    %v168 = vpop.f32.mrf.mxu0
    %v169 = vadd.f32 %v72, %v168
    %v170 = vpop.f32.mrf.mxu0
    %171 = vmatprep.mubr.f32.mxu0 0.0
    %172 = vmatmul.mubr.f32.gmra.mxu0 %v92
    %v173 = vpop.f32.mrf.mxu0
    %v174 = vadd.f32 %v77, %v173
    %v175 = vpop.f32.mrf.mxu0
    %176 = vmatprep.mubr.f32.mxu0 0.0
    %177 = vmatmul.mubr.f32.gmra.mxu0 %v95
    %v178 = vpop.f32.mrf.mxu0
    %v179 = vadd.f32 %v82, %v178
    %v180 = vpop.f32.mrf.mxu0
    %181 = vdwg.mxu0
    %v182 = vmax.f32 %v164, 0.0
    %v183 = vmax.f32 %v169, 0.0
    %v184 = vmax.f32 %v174, 0.0
    %v185 = vmax.f32 %v179, 0.0
    %v186 = vld [vmem:[#allocation2 + $0x40] sm:$0xff]
    %v187 = vld [vmem:[#allocation2 + $0x48] sm:$0xff]
    %v188 = vld [vmem:[#allocation2 + $0x50] sm:$0xff]
    %v189 = vld [vmem:[#allocation2 + $0x58] sm:$0xff]
    %191 = vset.pattern.permute.xlu0 0
    %192 = vperm.xlu0 %191, %v188
    %v193 = vpop.permute.xlu0 %192
    %196 = vset.pattern.permute.xlu0 0
    %197 = vperm.xlu0 %196, %v189
    %v198 = vpop.permute.xlu0 %197
    %vm200 = vcmask 261120
    %v202 = vsel %vm200, %v186, 0
    %v205 = vsel %vm200, %v187, 0
    %207 = vmatprep.subr.mxu0 0.0
    %208 = vmatpush1.msra.mxu0 0.0
    %209 = vmatprep.subr.mxu0 0.0
    %210 = vmatpush1.msra.mxu0 0.0
    %211 = vmatprep.subr.mxu0 0.0
    %212 = vmatpush1.msra.mxu0 0.0
    %213 = vmatprep.subr.mxu0 0.0
    %214 = vmatpush1.msra.mxu0 0.0
    %215 = vmatprep.subr.mxu0 0.0
    %216 = vmatpush1.msra.mxu0 0.0
    %217 = vmatprep.subr.mxu0 0.0
    %218 = vmatpush1.msra.mxu0 0.0
    %219 = vmatprep.subr.mxu0 0.0
    %220 = vmatpush1.msra.mxu0 0.0
    %221 = vmatprep.subr.mxu0 0.0
    %222 = vmatpush1.msra.mxu0 0.0
    %223 = vmatprep.subr.mxu0 0.0
    %224 = vmatpush1.msra.mxu0 0.0
    %225 = vmatprep.subr.mxu0 0.0
    %226 = vmatpush1.msra.mxu0 0.0
    %227 = vmatprep.subr.mxu0 0.0
    %228 = vmatpush1.msra.mxu0 0.0
    %229 = vmatprep.subr.mxu0 0.0
    %230 = vmatpush1.msra.mxu0 0.0
    %231 = vmatprep.subr.mxu0 0.0
    %232 = vmatpush1.msra.mxu0 %v185
    %233 = vmatprep.subr.mxu0 0.0
    %234 = vmatpush1.msra.mxu0 %v184
    %235 = vmatprep.subr.mxu0 0.0
    %236 = vmatpush1.msra.mxu0 %v183
    %237 = vmatprep.subr.mxu0 0.0
    %238 = vmatpush1.msra.mxu0 %v182
    %239 = vmatprep.subr.mxu0 0.0
    %240 = vmatpush2.msra.mxu0 0.0
    %241 = vmatprep.subr.mxu0 0.0
    %242 = vmatpush2.msra.mxu0 0.0
    %243 = vmatprep.subr.mxu0 0.0
    %244 = vmatpush2.msra.mxu0 0.0
    %245 = vmatprep.subr.mxu0 0.0
    %246 = vmatpush2.msra.mxu0 0.0
    %247 = vmatprep.subr.mxu0 0.0
    %248 = vmatpush2.msra.mxu0 0.0
    %249 = vmatprep.subr.mxu0 0.0
    %250 = vmatpush2.msra.mxu0 0.0
    %251 = vmatprep.subr.mxu0 0.0
    %252 = vmatpush2.msra.mxu0 0.0
    %253 = vmatprep.subr.mxu0 0.0
    %254 = vmatpush2.msra.mxu0 0.0
    %255 = vmatprep.subr.mxu0 0.0
    %256 = vmatpush2.msra.mxu0 0.0
    %257 = vmatprep.subr.mxu0 0.0
    %258 = vmatpush2.msra.mxu0 0.0
    %259 = vmatprep.subr.mxu0 0.0
    %260 = vmatpush2.msra.mxu0 0.0
    %261 = vmatprep.subr.mxu0 0.0
    %262 = vmatpush2.msra.mxu0 0.0
    %263 = vmatprep.subr.mxu0 0.0
    %264 = vmatpush2.msra.mxu0 0.0
    %265 = vmatprep.subr.mxu0 0.0
    %266 = vmatpush2.msra.mxu0 0.0
    %267 = vmatprep.subr.mxu0 0.0
    %268 = vmatpush2.msra.mxu0 0.0
    %269 = vmatprep.subr.mxu0 0.0
    %270 = vmatpush2.msra.mxu0 0.0
    %271 = vmatprep.mubr.f32.mxu0 0.0
    %272 = vmatmul.mubr.f32.gmra.mxu0 %v202
    %v273 = vpop.f32.mrf.mxu0
    %v274 = vadd.f32 %v193, %v273
    %v275 = vpop.f32.mrf.mxu0
    %276 = vmatprep.mubr.f32.mxu0 0.0
    %277 = vmatmul.mubr.f32.gmra.mxu0 %v205
    %v278 = vpop.f32.mrf.mxu0
    %v279 = vadd.f32 %v198, %v278
    %v280 = vpop.f32.mrf.mxu0
    %281 = vdwg.mxu0
    %v282 = vmax.f32 %v274, 0.0
    %v283 = vmax.f32 %v279, 0.0
    %v284 = vld [vmem:[#allocation2 + $0x60] sm:$0x3]
    %v285 = vld [vmem:[#allocation2 + $0x68] sm:$0xff]
    %v286 = vld [vmem:[#allocation2 + $0x70] sm:$0xff]
    %v287 = vld [vmem:[#allocation2 + $0x78] sm:$0x1]
    %289 = vset.pattern.permute.xlu0 0
    %290 = vperm.xlu0 %289, %v284
    %v291 = vpop.permute.xlu0 %290
    %v293 = vmul.f32 %v291, %v55
    %v294 = vmul.f32 %v291, %v46
    %v296 = vrot.slane %v294, 1
    %v298 = vadd.f32 %v293, %v296
    %300 = vset.pattern.permute.xlu0 0
    %301 = vperm.xlu0 %300, %v285
    %v302 = vpop.permute.xlu0 %301
    %305 = vset.pattern.permute.xlu0 0
    %306 = vperm.xlu0 %305, %v286
    %v307 = vpop.permute.xlu0 %306
    %v309 = vmul.f32 %v302, %v282
    %v310 = vmul.f32 %v307, %v283
    %v311 = vsel %vm38, %v309, 0.0
    %v312 = vsel %vm38, %v310, 0.0
    %v313 = vadd.f32 %v311, %v312
    %v314 = vrot.slane %v313, 4
    %v315 = vadd.f32 %v313, %v314
    %v316 = vrot.slane %v315, 2
    %v317 = vadd.f32 %v315, %v316
    %v318 = vrot.slane %v317, 1
    %v319 = vadd.f32 %v317, %v318
    %v320 = vadd.f32 %v298, %v319
    %322 = vset.pattern.permute.xlu0 0
    %323 = vperm.xlu0 %322, %v287
    %v324 = vpop.permute.xlu0 %323
    %v326 = vadd.f32 %v320, %v324
    %v327 = vsub.f32 0.0, %v326
    %v328 = vmul.f32 %v327, 1.442695
    %v329 = vpow.pop %v328
    %v330 = vadd.f32 %v329, 1.0
    %v331 = vrcp.pop %v330
    %v332 = vmul.f32 1.0, %v331
    %v333 = vld [vmem:[%s0 + $0x18] sm:$0xff]
    %v334 = vld [vmem:[#allocation2 + $0x80] sm:$0xff]
    %v335 = vld [vmem:[#allocation2 + $0x88] sm:$0xff]
    %v336 = vld [vmem:[#allocation2 + $0x90] sm:$0xff]
    %v337 = vld [vmem:[#allocation2 + $0x98] sm:$0xff]
    %v338 = vld [vmem:[#allocation2 + $0xa0] sm:$0xff]
    %v339 = vld [vmem:[#allocation2 + $0xa8] sm:$0xff]
    %v340 = vld [vmem:[#allocation2 + $0xb0] sm:$0xff]
    %v341 = vld [vmem:[#allocation2 + $0xb8] sm:$0xff]
    %343 = vset.pattern.permute.xlu0 0
    %344 = vperm.xlu0 %343, %v338
    %v345 = vpop.permute.xlu0 %344
    %348 = vset.pattern.permute.xlu0 0
    %349 = vperm.xlu0 %348, %v339
    %v350 = vpop.permute.xlu0 %349
    %353 = vset.pattern.permute.xlu0 0
    %354 = vperm.xlu0 %353, %v340
    %v355 = vpop.permute.xlu0 %354
    %358 = vset.pattern.permute.xlu0 0
    %359 = vperm.xlu0 %358, %v341
    %v360 = vpop.permute.xlu0 %359
    %vm362 = vcmask 64512
    %v364 = vsel %vm362, %v334, 0
    %v367 = vsel %vm362, %v335, 0
    %v370 = vsel %vm362, %v336, 0
    %v373 = vsel %vm362, %v337, 0
    %375 = vmatprep.subr.mxu0 0.0
    %376 = vmatpush1.msra.mxu0 0.0
    %377 = vmatprep.subr.mxu0 0.0
    %378 = vmatpush1.msra.mxu0 0.0
    %379 = vmatprep.subr.mxu0 0.0
    %380 = vmatpush1.msra.mxu0 0.0
    %381 = vmatprep.subr.mxu0 0.0
    %382 = vmatpush1.msra.mxu0 0.0
    %383 = vmatprep.subr.mxu0 0.0
    %384 = vmatpush1.msra.mxu0 0.0
    %385 = vmatprep.subr.mxu0 0.0
    %386 = vmatpush1.msra.mxu0 0.0
    %387 = vmatprep.subr.mxu0 0.0
    %388 = vmatpush1.msra.mxu0 0.0
    %389 = vmatprep.subr.mxu0 0.0
    %390 = vmatpush1.msra.mxu0 0.0
    %391 = vmatprep.subr.mxu0 0.0
    %392 = vmatpush1.msra.mxu0 0.0
    %393 = vmatprep.subr.mxu0 0.0
    %394 = vmatpush1.msra.mxu0 0.0
    %395 = vmatprep.subr.mxu0 0.0
    %396 = vmatpush1.msra.mxu0 0.0
    %397 = vmatprep.subr.mxu0 0.0
    %398 = vmatpush1.msra.mxu0 0.0
    %399 = vmatprep.subr.mxu0 0.0
    %400 = vmatpush1.msra.mxu0 0.0
    %401 = vmatprep.subr.mxu0 0.0
    %402 = vmatpush1.msra.mxu0 0.0
    %403 = vmatprep.subr.mxu0 0.0
    %404 = vmatpush1.msra.mxu0 0.0
    %405 = vmatprep.subr.mxu0 0.0
    %406 = vmatpush1.msra.mxu0 %v333
    %407 = vmatprep.subr.mxu0 0.0
    %408 = vmatpush2.msra.mxu0 0.0
    %409 = vmatprep.subr.mxu0 0.0
    %410 = vmatpush2.msra.mxu0 0.0
    %411 = vmatprep.subr.mxu0 0.0
    %412 = vmatpush2.msra.mxu0 0.0
    %413 = vmatprep.subr.mxu0 0.0
    %414 = vmatpush2.msra.mxu0 0.0
    %415 = vmatprep.subr.mxu0 0.0
    %416 = vmatpush2.msra.mxu0 0.0
    %417 = vmatprep.subr.mxu0 0.0
    %418 = vmatpush2.msra.mxu0 0.0
    %419 = vmatprep.subr.mxu0 0.0
    %420 = vmatpush2.msra.mxu0 0.0
    %421 = vmatprep.subr.mxu0 0.0
    %422 = vmatpush2.msra.mxu0 0.0
    %423 = vmatprep.subr.mxu0 0.0
    %424 = vmatpush2.msra.mxu0 0.0
    %425 = vmatprep.subr.mxu0 0.0
    %426 = vmatpush2.msra.mxu0 0.0
    %427 = vmatprep.subr.mxu0 0.0
    %428 = vmatpush2.msra.mxu0 0.0
    %429 = vmatprep.subr.mxu0 0.0
    %430 = vmatpush2.msra.mxu0 0.0
    %431 = vmatprep.subr.mxu0 0.0
    %432 = vmatpush2.msra.mxu0 0.0
    %433 = vmatprep.subr.mxu0 0.0
    %434 = vmatpush2.msra.mxu0 0.0
    %435 = vmatprep.subr.mxu0 0.0
    %436 = vmatpush2.msra.mxu0 0.0
    %437 = vmatprep.subr.mxu0 0.0
    %438 = vmatpush2.msra.mxu0 0.0
    %439 = vmatprep.mubr.f32.mxu0 0.0
    %440 = vmatmul.mubr.f32.gmra.mxu0 %v364
    %v441 = vpop.f32.mrf.mxu0
    %v442 = vadd.f32 %v345, %v441
    %v443 = vpop.f32.mrf.mxu0
    %444 = vmatprep.mubr.f32.mxu0 0.0
    %445 = vmatmul.mubr.f32.gmra.mxu0 %v367
    %v446 = vpop.f32.mrf.mxu0
    %v447 = vadd.f32 %v350, %v446
    %v448 = vpop.f32.mrf.mxu0
    %449 = vmatprep.mubr.f32.mxu0 0.0
    %450 = vmatmul.mubr.f32.gmra.mxu0 %v370
    %v451 = vpop.f32.mrf.mxu0
    %v452 = vadd.f32 %v355, %v451
    %v453 = vpop.f32.mrf.mxu0
    %454 = vmatprep.mubr.f32.mxu0 0.0
    %455 = vmatmul.mubr.f32.gmra.mxu0 %v373
    %v456 = vpop.f32.mrf.mxu0
    %v457 = vadd.f32 %v360, %v456
    %v458 = vpop.f32.mrf.mxu0
    %459 = vdwg.mxu0
    %v460 = vmax.f32 %v442, 0.0
    %v461 = vmax.f32 %v447, 0.0
    %v462 = vmax.f32 %v452, 0.0
    %v463 = vmax.f32 %v457, 0.0
    %v464 = vld [vmem:[#allocation2 + $0xc0] sm:$0xff]
    %v465 = vld [vmem:[#allocation2 + $0xc8] sm:$0xff]
    %v466 = vld [vmem:[#allocation2 + $0xd0] sm:$0xff]
    %v467 = vld [vmem:[#allocation2 + $0xd8] sm:$0xff]
    %469 = vset.pattern.permute.xlu0 0
    %470 = vperm.xlu0 %469, %v466
    %v471 = vpop.permute.xlu0 %470
    %474 = vset.pattern.permute.xlu0 0
    %475 = vperm.xlu0 %474, %v467
    %v476 = vpop.permute.xlu0 %475
    %v479 = vsel %vm200, %v464, 0
    %v482 = vsel %vm200, %v465, 0
    %484 = vmatprep.subr.mxu0 0.0
    %485 = vmatpush1.msra.mxu0 0.0
    %486 = vmatprep.subr.mxu0 0.0
    %487 = vmatpush1.msra.mxu0 0.0
    %488 = vmatprep.subr.mxu0 0.0
    %489 = vmatpush1.msra.mxu0 0.0
    %490 = vmatprep.subr.mxu0 0.0
    %491 = vmatpush1.msra.mxu0 0.0
    %492 = vmatprep.subr.mxu0 0.0
    %493 = vmatpush1.msra.mxu0 0.0
    %494 = vmatprep.subr.mxu0 0.0
    %495 = vmatpush1.msra.mxu0 0.0
    %496 = vmatprep.subr.mxu0 0.0
    %497 = vmatpush1.msra.mxu0 0.0
    %498 = vmatprep.subr.mxu0 0.0
    %499 = vmatpush1.msra.mxu0 0.0
    %500 = vmatprep.subr.mxu0 0.0
    %501 = vmatpush1.msra.mxu0 0.0
    %502 = vmatprep.subr.mxu0 0.0
    %503 = vmatpush1.msra.mxu0 0.0
    %504 = vmatprep.subr.mxu0 0.0
    %505 = vmatpush1.msra.mxu0 0.0
    %506 = vmatprep.subr.mxu0 0.0
    %507 = vmatpush1.msra.mxu0 0.0
    %508 = vmatprep.subr.mxu0 0.0
    %509 = vmatpush1.msra.mxu0 %v463
    %510 = vmatprep.subr.mxu0 0.0
    %511 = vmatpush1.msra.mxu0 %v462
    %512 = vmatprep.subr.mxu0 0.0
    %513 = vmatpush1.msra.mxu0 %v461
    %514 = vmatprep.subr.mxu0 0.0
    %515 = vmatpush1.msra.mxu0 %v460
    %516 = vmatprep.subr.mxu0 0.0
    %517 = vmatpush2.msra.mxu0 0.0
    %518 = vmatprep.subr.mxu0 0.0
    %519 = vmatpush2.msra.mxu0 0.0
    %520 = vmatprep.subr.mxu0 0.0
    %521 = vmatpush2.msra.mxu0 0.0
    %522 = vmatprep.subr.mxu0 0.0
    %523 = vmatpush2.msra.mxu0 0.0
    %524 = vmatprep.subr.mxu0 0.0
    %525 = vmatpush2.msra.mxu0 0.0
    %526 = vmatprep.subr.mxu0 0.0
    %527 = vmatpush2.msra.mxu0 0.0
    %528 = vmatprep.subr.mxu0 0.0
    %529 = vmatpush2.msra.mxu0 0.0
    %530 = vmatprep.subr.mxu0 0.0
    %531 = vmatpush2.msra.mxu0 0.0
    %532 = vmatprep.subr.mxu0 0.0
    %533 = vmatpush2.msra.mxu0 0.0
    %534 = vmatprep.subr.mxu0 0.0
    %535 = vmatpush2.msra.mxu0 0.0
    %536 = vmatprep.subr.mxu0 0.0
    %537 = vmatpush2.msra.mxu0 0.0
    %538 = vmatprep.subr.mxu0 0.0
    %539 = vmatpush2.msra.mxu0 0.0
    %540 = vmatprep.subr.mxu0 0.0
    %541 = vmatpush2.msra.mxu0 0.0
    %542 = vmatprep.subr.mxu0 0.0
    %543 = vmatpush2.msra.mxu0 0.0
    %544 = vmatprep.subr.mxu0 0.0
    %545 = vmatpush2.msra.mxu0 0.0
    %546 = vmatprep.subr.mxu0 0.0
    %547 = vmatpush2.msra.mxu0 0.0
    %548 = vmatprep.mubr.f32.mxu0 0.0
    %549 = vmatmul.mubr.f32.gmra.mxu0 %v479
    %v550 = vpop.f32.mrf.mxu0
    %v551 = vadd.f32 %v471, %v550
    %v552 = vpop.f32.mrf.mxu0
    %553 = vmatprep.mubr.f32.mxu0 0.0
    %554 = vmatmul.mubr.f32.gmra.mxu0 %v482
    %v555 = vpop.f32.mrf.mxu0
    %v556 = vadd.f32 %v476, %v555
    %v557 = vpop.f32.mrf.mxu0
    %558 = vdwg.mxu0
    %v559 = vmax.f32 %v551, 0.0
    %v560 = vmax.f32 %v556, 0.0
    %v561 = vld [vmem:[#allocation2 + $0xe0] sm:$0xff]
    %v562 = vld [vmem:[#allocation2 + $0xe8] sm:$0xff]
    %v563 = vld [vmem:[#allocation2 + $0xf0] sm:$0x1]
    %v564 = vld [vmem:[#allocation2 + $0xf8] sm:$0x1]
    %566 = vset.pattern.permute.xlu0 0
    %567 = vperm.xlu0 %566, %v561
    %v568 = vpop.permute.xlu0 %567
    %571 = vset.pattern.permute.xlu0 0
    %572 = vperm.xlu0 %571, %v562
    %v573 = vpop.permute.xlu0 %572
    %v575 = vmul.f32 %v568, %v559
    %v576 = vmul.f32 %v573, %v560
    %v577 = vsel %vm38, %v575, 0.0
    %v578 = vsel %vm38, %v576, 0.0
    %v579 = vadd.f32 %v577, %v578
    %v580 = vrot.slane %v579, 4
    %v581 = vadd.f32 %v579, %v580
    %v582 = vrot.slane %v581, 2
    %v583 = vadd.f32 %v581, %v582
    %v584 = vrot.slane %v583, 1
    %v585 = vadd.f32 %v583, %v584
    %587 = vset.pattern.permute.xlu0 0
    %588 = vperm.xlu0 %587, %v563
    %v589 = vpop.permute.xlu0 %588
    %v591 = vmul.f32 %v589, %v332
    %v592 = vadd.f32 %v585, %v591
    %594 = vset.pattern.permute.xlu0 0
    %595 = vperm.xlu0 %594, %v564
    %v596 = vpop.permute.xlu0 %595
    %v598 = vadd.f32 %v592, %v596
    %v599 = vsub.f32 0.0, %v598
    %v600 = vmul.f32 %v599, 1.442695
    %v601 = vpow.pop %v600
    %v602 = vadd.f32 %v601, 1.0
    %v603 = vrcp.pop %v602
    %v604 = vmul.f32 1.0, %v603
    %vm605 = vcmask 122880
    %606 = vst.msk [vmem:[#allocation5] sm:$0x1] %vm605, %v604
    // Predicated region
    $region14: #{tpu_custom_call.1} parent=1 // pred_check
      _
    $region15: #{tpu_custom_call.1} parent=1 // pred_check_branch
      %608 = sbr.rel (0) target = $region17
    $region16: #{tpu_custom_call.1} parent=1 // pred_region
      %s610 = ssub.s32 16, 16
      %611 = vsyncadd [#allocation4], %s610
      %s613 = sshll.u32 [#allocation5], 4
      %s614 = int_to_ptr.vmem [resolvable:$true] %s613
      %616 = dma.vmem_to_hbm [thread:$0]  %s614, 16, %s2, [#allocation4]
    $region17: #{tpu_custom_call.1} parent=1 // pred_fallthru
      _
    // Predicated region
    $region18: #{tpu_custom_call.1} parent=1 // pred_check
      _
    $region19: #{tpu_custom_call.1} parent=1 // pred_check_branch
      %618 = sbr.rel (0) target = $region21
    $region20: #{tpu_custom_call.1} parent=1 // pred_region
      %619 = dma.done [#allocation4], 16
    $region21: #{tpu_custom_call.1} parent=1 // pred_fallthru
      _
    %620 = vsyncpa [#allocation3], 1
    %621 = vsyncpa [#allocation4], 1

</llo_original>
